<compile_context>
chip_gen: v7x
topology: tpu7x:2x2x1
jax: 0.10.0
libtpu: 0.0.40
codegen_flags: <defaults>
</compile_context>

<pallas_src>
import functools

import jax
import jax.numpy as jnp
import numpy as np
from jax import lax
from jax.experimental import pallas as pl
from jax.experimental.pallas import tpu as pltpu


def _calsim_kernel(x_ref, w_ref, b_ref, out_ref, *, H, W, BB):
    # x_ref : (BB, C, H*W) VMEM    w_ref : (8, C) VMEM    b_ref : (4,) SMEM
    # out_ref: (BB, 4, H*W) VMEM
    HW = H * W
    w = w_ref[...]                                   # (8, C)
    b_up, b_down = b_ref[0], b_ref[1]
    b_left, b_right = b_ref[2], b_ref[3]

    for bi in range(BB):                             # BB is small & static
        x = x_ref[bi]                                # (C, H*W)
        # Channel reduction for all 8 taps in one MXU matmul, result stays
        # lane-dense over H*W (no (8,H,W) reshape / relayout).
        y = jnp.dot(w, x, preferred_element_type=jnp.float32)   # (8, H*W)

        # Flat-space shifts on the XLU: row-shift (+W lanes) and col-shift
        # (+1 lane).  Wrap-around garbage only lands at h==H-1 / w==W-1
        # positions, which the wrapper slices away.
        y_row = pltpu.roll(y, HW - W, axis=1)        # y_row[t, s] = y[t, s + W]
        y_col = pltpu.roll(y, HW - 1, axis=1)        # y_col[t, s] = y[t, s + 1]

        up    = y[0:1] + y_row[1:2] + b_up
        down  = y[2:3] + y_row[3:4] + b_down
        left  = y[4:5] + y_col[5:6] + b_left
        right = y[6:7] + y_col[7:8] + b_right

        out = jnp.concatenate([up, down, left, right], axis=0)  # (4, H*W)
        out_ref[bi] = out.astype(out_ref.dtype)


def _pick_block_batch(B):
    # Largest batch block that divides B while keeping >= 2 grid steps
    # (so both v7x TensorCores get work on the "parallel" batch axis).
    for cand in (8, 4, 2):
        if B % cand == 0 and B // cand >= 2:
            return cand
    return 1


def calsim_heads(x, w_up, b_up, w_down, b_down, w_left, b_left, w_right, b_right,
                 *, block_batch=None):
    """x: [B, C, H, W] (NCHW).  Conv weights in PyTorch layout:
       w_up/w_down: [1, C, 2, 1], w_left/w_right: [1, C, 1, 2], biases: [1]."""
    B, C, H, W = x.shape
    HW = H * W
    x_flat = x.reshape(B, C, HW)

    # Stack the 8 taps into a single [8, C] weight matrix.
    w8 = jnp.stack([
        w_up[0, :, 0, 0],    w_up[0, :, 1, 0],
        w_down[0, :, 0, 0],  w_down[0, :, 1, 0],
        w_left[0, :, 0, 0],  w_left[0, :, 0, 1],
        w_right[0, :, 0, 0], w_right[0, :, 0, 1],
    ], axis=0).astype(jnp.float32)                                 # (8, C)
    bias = jnp.stack([b_up[0], b_down[0], b_left[0], b_right[0]]
                     ).astype(jnp.float32)                          # (4,) -> SMEM

    bb = _pick_block_batch(B) if block_batch is None else block_batch
    assert B % bb == 0, "block_batch must divide the batch size"

    kernel = functools.partial(_calsim_kernel, H=H, W=W, BB=bb)

    grid_spec = pltpu.PrefetchScalarGridSpec(
        num_scalar_prefetch=0,
        grid=(B // bb,),
        in_specs=[
            pl.BlockSpec((bb, C, HW), lambda b: (b, 0, 0)),
            pl.BlockSpec((8, C), lambda b: (0, 0)),
            pl.BlockSpec(memory_space=pltpu.MemorySpace.SMEM),      # bias scalars
        ],
        out_specs=pl.BlockSpec((bb, 4, HW), lambda b: (b, 0, 0)),
    )

    out = pl.pallas_call(
        kernel,
        out_shape=jax.ShapeDtypeStruct((B, 4, HW), x.dtype),
        grid_spec=grid_spec,
        compiler_params=pltpu.CompilerParams(dimension_semantics=("parallel",)),
    )(x_flat, w8, bias)

    # Layout plumbing in the wrapper: split the fused lane-dense output back
    # into the four NCHW head tensors, discarding the invalid shifted borders.
    out = out.reshape(B, 4, H, W)
    up    = out[:, 0:1, :H - 1, :]
    down  = out[:, 1:2, :H - 1, :]
    left  = out[:, 2:3, :, :W - 1]
    right = out[:, 3:4, :, :W - 1]
    return up, down, left, right


def _ref_conv(x, w, b):
    """Plain-JAX reference: NCHW conv, stride 1, VALID padding."""
    out = lax.conv_general_dilated(
        x, w, window_strides=(1, 1), padding="VALID",
        dimension_numbers=("NCHW", "OIHW", "NCHW"))
    return out + b.reshape(1, -1, 1, 1)


if __name__ == "__main__":
    key = jax.random.PRNGKey(0)
    kx, k1, k2, k3, k4, k5, k6, k7, k8 = jax.random.split(key, 9)

    B, C, H, W = 2, 112, 16, 16          # 112-channel feature map from backbone
    x = jax.random.normal(kx, (B, C, H, W), dtype=jnp.float32)

    # Deterministic parameter init (PyTorch Conv2d weight layout [O, I, kh, kw]).
    w_up    = 0.05 * jax.random.normal(k1, (1, C, 2, 1), dtype=jnp.float32)
    w_down  = 0.05 * jax.random.normal(k2, (1, C, 2, 1), dtype=jnp.float32)
    w_left  = 0.05 * jax.random.normal(k3, (1, C, 1, 2), dtype=jnp.float32)
    w_right = 0.05 * jax.random.normal(k4, (1, C, 1, 2), dtype=jnp.float32)
    b_up    = jax.random.normal(k5, (1,), dtype=jnp.float32)
    b_down  = jax.random.normal(k6, (1,), dtype=jnp.float32)
    b_left  = jax.random.normal(k7, (1,), dtype=jnp.float32)
    b_right = jax.random.normal(k8, (1,), dtype=jnp.float32)

    up, down, left, right = jax.block_until_ready(
        calsim_heads(x, w_up, b_up, w_down, b_down,
                     w_left, b_left, w_right, b_right))

    # Correctness check against plain-JAX convolutions.
    ref_up    = _ref_conv(x, w_up, b_up)
    ref_down  = _ref_conv(x, w_down, b_down)
    ref_left  = _ref_conv(x, w_left, b_left)
    ref_right = _ref_conv(x, w_right, b_right)

    assert up.shape == (B, 1, H - 1, W) and left.shape == (B, 1, H, W - 1)
    np.testing.assert_allclose(np.asarray(up),    np.asarray(ref_up),    rtol=1e-4, atol=1e-4)
    np.testing.assert_allclose(np.asarray(down),  np.asarray(ref_down),  rtol=1e-4, atol=1e-4)
    np.testing.assert_allclose(np.asarray(left),  np.asarray(ref_left),  rtol=1e-4, atol=1e-4)
    np.testing.assert_allclose(np.asarray(right), np.asarray(ref_right), rtol=1e-4, atol=1e-4)

    print("KERNEL_OK")
</pallas_src>

<mosaic_0001>
module attributes {stable_mosaic.version = 11 : i64} {
  func.func @_calsim_kernel(%arg0: i32, %arg1: memref<1x112x256xf32, #tpu.memory_space<vmem>>, %arg2: memref<8x112xf32, #tpu.memory_space<vmem>>, %arg3: memref<4xf32, #tpu.memory_space<smem>>, %arg4: memref<1x4x256xf32, #tpu.memory_space<vmem>>) attributes {dimension_semantics = [#tpu.dimension_semantics<parallel>], iteration_bounds = array<i64: 2>, scalar_prefetch = 0 : i64, scratch_operands = 0 : i64, tpu.core_type = #tpu.core_type<tc>, window_params = [{transform_indices = @transform_0, window_bounds = array<i64: 1, 112, 256>}, {pipeline_mode = #tpu.pipeline_mode<synchronous>, transform_indices = @transform_1, window_bounds = array<i64: 8, 112>}, {transform_indices = @transform_2, window_bounds = array<i64: 4>}, {transform_indices = @transform_3, window_bounds = array<i64: 1, 4, 256>}]} {
    %c0 = arith.constant 0 : index
    %c0_0 = arith.constant 0 : index
    %0 = vector.load %arg2[%c0, %c0_0] : memref<8x112xf32, #tpu.memory_space<vmem>>, vector<8x112xf32>
    %c0_1 = arith.constant 0 : index
    %1 = memref.load %arg3[%c0_1] : memref<4xf32, #tpu.memory_space<smem>>
    %c1 = arith.constant 1 : index
    %2 = memref.load %arg3[%c1] : memref<4xf32, #tpu.memory_space<smem>>
    %c2 = arith.constant 2 : index
    %3 = memref.load %arg3[%c2] : memref<4xf32, #tpu.memory_space<smem>>
    %c3 = arith.constant 3 : index
    %4 = memref.load %arg3[%c3] : memref<4xf32, #tpu.memory_space<smem>>
    %c0_2 = arith.constant 0 : index
    %c0_3 = arith.constant 0 : index
    %c0_4 = arith.constant 0 : index
    %5 = vector.load %arg1[%c0_2, %c0_3, %c0_4] : memref<1x112x256xf32, #tpu.memory_space<vmem>>, vector<1x112x256xf32>
    %6 = vector.shape_cast %5 : vector<1x112x256xf32> to vector<112x256xf32>
    %cst = arith.constant dense<0.000000e+00> : vector<8x256xf32>
    %7 = tpu.matmul %0, %6, %cst {dimension_numbers = #tpu.dot_dimension_numbers<[1], [0], [0], [1], [0, 0, 1, 1], [], []>} : vector<8x112xf32>, vector<112x256xf32>, vector<8x256xf32> -> vector<8x256xf32>
    %c240_i32 = arith.constant 240 : i32
    %8 = tpu.dynamic_rotate %7 by %c240_i32 dim 1 : vector<8x256xf32>, i32 -> vector<8x256xf32>
    %c255_i32 = arith.constant 255 : i32
    %9 = tpu.dynamic_rotate %7 by %c255_i32 dim 1 : vector<8x256xf32>, i32 -> vector<8x256xf32>
    %10 = vector.extract_strided_slice %7 {offsets = [0, 0], sizes = [1, 256], strides = [1, 1]} : vector<8x256xf32> to vector<1x256xf32>
    %11 = vector.extract_strided_slice %8 {offsets = [1, 0], sizes = [1, 256], strides = [1, 1]} : vector<8x256xf32> to vector<1x256xf32>
    %12 = arith.addf %10, %11 : vector<1x256xf32>
    %13 = vector.broadcast %1 : f32 to vector<1x256xf32>
    %14 = arith.addf %12, %13 : vector<1x256xf32>
    %15 = vector.extract_strided_slice %7 {offsets = [2, 0], sizes = [1, 256], strides = [1, 1]} : vector<8x256xf32> to vector<1x256xf32>
    %16 = vector.extract_strided_slice %8 {offsets = [3, 0], sizes = [1, 256], strides = [1, 1]} : vector<8x256xf32> to vector<1x256xf32>
    %17 = arith.addf %15, %16 : vector<1x256xf32>
    %18 = vector.broadcast %2 : f32 to vector<1x256xf32>
    %19 = arith.addf %17, %18 : vector<1x256xf32>
    %20 = vector.extract_strided_slice %7 {offsets = [4, 0], sizes = [1, 256], strides = [1, 1]} : vector<8x256xf32> to vector<1x256xf32>
    %21 = vector.extract_strided_slice %9 {offsets = [5, 0], sizes = [1, 256], strides = [1, 1]} : vector<8x256xf32> to vector<1x256xf32>
    %22 = arith.addf %20, %21 : vector<1x256xf32>
    %23 = vector.broadcast %3 : f32 to vector<1x256xf32>
    %24 = arith.addf %22, %23 : vector<1x256xf32>
    %25 = vector.extract_strided_slice %7 {offsets = [6, 0], sizes = [1, 256], strides = [1, 1]} : vector<8x256xf32> to vector<1x256xf32>
    %26 = vector.extract_strided_slice %9 {offsets = [7, 0], sizes = [1, 256], strides = [1, 1]} : vector<8x256xf32> to vector<1x256xf32>
    %27 = arith.addf %25, %26 : vector<1x256xf32>
    %28 = vector.broadcast %4 : f32 to vector<1x256xf32>
    %29 = arith.addf %27, %28 : vector<1x256xf32>
    %30 = tpu.concatenate %14, %19, %24, %29 in 0 : vector<1x256xf32>, vector<1x256xf32>, vector<1x256xf32>, vector<1x256xf32> -> vector<4x256xf32>
    %c0_5 = arith.constant 0 : index
    %c0_6 = arith.constant 0 : index
    %c0_7 = arith.constant 0 : index
    %31 = vector.load %arg4[%c0_5, %c0_6, %c0_7] : memref<1x4x256xf32, #tpu.memory_space<vmem>>, vector<1x4x256xf32>
    %32 = vector.shape_cast %31 : vector<1x4x256xf32> to vector<4x256xf32>
    %33 = vector.shape_cast %30 : vector<4x256xf32> to vector<1x4x256xf32>
    tpu.vector_store %arg4[%c0_5, %c0_6, %c0_7], %33 {strides = array<i32>} : memref<1x4x256xf32, #tpu.memory_space<vmem>>, vector<1x4x256xf32>,
    return
  }
  func.func @transform_0(%arg0: i32) -> (i32, i32, i32) {
    %c0_i32 = arith.constant 0 : i32
    %c0_i32_0 = arith.constant 0 : i32
    %c0_i32_1 = arith.constant 0 : i32
    return %arg0, %c0_i32, %c0_i32_0 : i32, i32, i32
  }
  func.func @transform_1(%arg0: i32) -> (i32, i32) {
    %c0_i32 = arith.constant 0 : i32
    %c0_i32_0 = arith.constant 0 : i32
    %c0_i32_1 = arith.constant 0 : i32
    return %c0_i32, %c0_i32_0 : i32, i32
  }
  func.func @transform_2(%arg0: i32) -> i32 {
    %c0_i32 = arith.constant 0 : i32
    %c0_i32_0 = arith.constant 0 : i32
    return %c0_i32 : i32
  }
  func.func @transform_3(%arg0: i32) -> (i32, i32, i32) {
    %c0_i32 = arith.constant 0 : i32
    %c0_i32_0 = arith.constant 0 : i32
    %c0_i32_1 = arith.constant 0 : i32
    return %arg0, %c0_i32, %c0_i32_0 : i32, i32, i32
  }
}

</mosaic_0001>

<llo_original>
// kernel: tpu_custom_call.1
$region0: #{tpu_custom_call.1}
  #allocation0 [shape = 'u32[]', space=smem, size = 0x4, offset = 0x4, fixed_abs, tag = 'smem constant byte address 0x4 - core index']
  #allocation1 [shape = 'u32[144,128]{1,0:T(1,128)}', space=vmem, size = 0x12000, scoped, tag = 'internal scratch']
  %s0 = inlined_call_operand.hbm [shape: f32[2,112,256], index: 0, kind: input, shape index: {}]
  %s1 = inlined_call_operand.hbm [shape: f32[8,112], index: 1, kind: input, shape index: {}]
  %s2 = inlined_call_operand.vmem [shape: f32[4], index: 2, kind: input, shape index: {}]
  %s3 = inlined_call_operand.hbm [shape: f32[2,4,256], index: 3, kind: output, shape index: {}]
  %s4 = sld [smem:[#allocation0]]
  $region57: #{tpu_custom_call.1} parent=0
    _
  %s6 = ssub.s32 1, %s4
  %s7 = scalar_select 0, %s6, %s4
  $region1: #{tpu_custom_call.1} parent=0
    #allocation2 [shape = 'u8[229376]{0}', space=vmem, size = 0x38000, scoped, tag = 'input window, operand 0']
    #allocation3 [shape = 's32[2]{0}', space=sflag, size = 0x8, scoped, tag = 'scoped memory for tpu_custom_call.1']
    #allocation4 [shape = 's32[2]{0}', space=sflag, size = 0x8, scoped, tag = 'scoped memory for tpu_custom_call.1']
    #allocation5 [shape = 's32[2]{0}', space=sflag, size = 0x8, scoped, tag = 'scoped memory for tpu_custom_call.1']
    #allocation6 [shape = 'u8[4096]{0}', space=vmem, size = 0x1000, scoped, tag = 'input window, operand 1, single buffered']
    #allocation7 [shape = 's32[1]{0}', space=sflag, size = 0x4, scoped, tag = 'scoped memory for tpu_custom_call.1']
    #allocation8 [shape = 'u8[512]{0}', space=smem, size = 0x200, scoped, tag = 'input window, operand 2, single buffered']
    #allocation9 [shape = 'u8[8192]{0}', space=vmem, size = 0x2000, scoped, tag = 'output window, operand 0']
    %8 = vsyncpa [#allocation3], 0
    %s9 = scalar_lea.sflag [#allocation3], 1
    %10 = vsyncpa %s9, 0
    %11 = vsyncpa [#allocation7], 0
    %12 = vsyncpa [#allocation5], 0
    %13 = vsyncpa [#allocation4], 0
    %s14 = scalar_lea.sflag [#allocation4], 1
    %15 = vsyncpa %s14, 0
    loop: start=0, step=1, limit=4
    $region2: #{tpu_custom_call.1} parent=1 // loop_pre_header
      _
    $region3: #{tpu_custom_call.1} parent=1 // loop_header
      %s17 = sphi 0, %s21
      %p18 = scmp.ge.s32.totalorder %s17, 4
      %s27 = sphi 0, %s29
      %s30 = sphi 0, %s27
      %s31 = sphi 0, %s30
      %s47 = sphi 0, %s31
      %s51 = sphi 0, %s51
      %s53 = sphi 0, %s51
      %s54 = sphi 0, %s53
      %s68 = sphi 0, %s54
      %s72 = sphi 0, %s72
      %s74 = sphi 0, %s72
      %s75 = sphi 0, %s74
      %s89 = sphi 0, %s75
      %s95 = sphi 0, %s97
      %s98 = sphi 0, %s95
      %s99 = sphi 0, %s98
      %s115 = sphi 0, %s99
    $region4: #{tpu_custom_call.1} parent=1 // loop_header_branch
      %20 = sbr.rel (%p18) target = $region8
    $region5: #{tpu_custom_call.1} parent=1 // loop_body
      %s22 = ssub.s32 %s17, 1
      %s23 = ssub.s32 %s17, 2
      %s24 = sadd.s32 %s17, 1
      %s25 = ssub.s32 %s17, %s24
      %p26 = scmp.eq.s32.totalorder %s25, 0
      %s28 = sadd.s32 %s27, 1
      %s29 = scalar_select %p26, %s27, %s28
      %p32 = pneg %p26
      %p33 = scmp.eq.s32.totalorder %s17, 1
      %p34 = por %p32, %p33
      %p35 = scmp.ne.s32.totalorder %s27, %s30
      %p36 = scmp.eq.s32.totalorder %s17, 0
      %p37 = por %p35, %p36
      %p38 = scmp.ne.s32.totalorder %s27, %s30
      %p39 = scmp.eq.s32.totalorder %s22, 1
      %p40 = por %p38, %p39
      %p41 = scmp.ne.s32.totalorder %s30, %s31
      %p42 = scmp.eq.s32.totalorder %s22, 0
      %p43 = por %p41, %p42
      %p44 = scmp.ne.s32.totalorder %s30, %s31
      %p45 = scmp.eq.s32.totalorder %s23, 1
      %p46 = por %p44, %p45
      %p48 = scmp.ne.s32.totalorder %s31, %s47
      %p49 = scmp.eq.s32.totalorder %s23, 0
      %p50 = por %p48, %p49
      %s52 = sadd.s32 %s51, 1
      %p55 = scmp.eq.s32.totalorder %s17, 1
      %p56 = scmp.ne.s32.totalorder %s51, %s53
      %p57 = scmp.eq.s32.totalorder %s17, 0
      %p58 = por %p56, %p57
      %p59 = scmp.ne.s32.totalorder %s51, %s53
      %p60 = scmp.eq.s32.totalorder %s22, 1
      %p61 = por %p59, %p60
      %p62 = scmp.ne.s32.totalorder %s53, %s54
      %p63 = scmp.eq.s32.totalorder %s22, 0
      %p64 = por %p62, %p63
      %p65 = scmp.ne.s32.totalorder %s53, %s54
      %p66 = scmp.eq.s32.totalorder %s23, 1
      %p67 = por %p65, %p66
      %p69 = scmp.ne.s32.totalorder %s54, %s68
      %p70 = scmp.eq.s32.totalorder %s23, 0
      %p71 = por %p69, %p70
      %s73 = sadd.s32 %s72, 1
      %p76 = scmp.eq.s32.totalorder %s17, 1
      %p77 = scmp.ne.s32.totalorder %s72, %s74
      %p78 = scmp.eq.s32.totalorder %s17, 0
      %p79 = por %p77, %p78
      %p80 = scmp.ne.s32.totalorder %s72, %s74
      %p81 = scmp.eq.s32.totalorder %s22, 1
      %p82 = por %p80, %p81
      %p83 = scmp.ne.s32.totalorder %s74, %s75
      %p84 = scmp.eq.s32.totalorder %s22, 0
      %p85 = por %p83, %p84
      %p86 = scmp.ne.s32.totalorder %s74, %s75
      %p87 = scmp.eq.s32.totalorder %s23, 1
      %p88 = por %p86, %p87
      %p90 = scmp.ne.s32.totalorder %s75, %s89
      %p91 = scmp.eq.s32.totalorder %s23, 0
      %p92 = por %p90, %p91
      %s93 = ssub.s32 %s17, %s24
      %p94 = scmp.eq.s32.totalorder %s93, 0
      %s96 = sadd.s32 %s95, 1
      %s97 = scalar_select %p94, %s95, %s96
      %p100 = pneg %p94
      %p101 = scmp.eq.s32.totalorder %s17, 1
      %p102 = por %p100, %p101
      %p103 = scmp.ne.s32.totalorder %s95, %s98
      %p104 = scmp.eq.s32.totalorder %s17, 0
      %p105 = por %p103, %p104
      %p106 = scmp.ne.s32.totalorder %s95, %s98
      %p107 = scmp.eq.s32.totalorder %s22, 1
      %p108 = por %p106, %p107
      %p109 = scmp.ne.s32.totalorder %s98, %s99
      %p110 = scmp.eq.s32.totalorder %s22, 0
      %p111 = por %p109, %p110
      %p112 = scmp.ne.s32.totalorder %s98, %s99
      %p113 = scmp.eq.s32.totalorder %s23, 1
      %p114 = por %p112, %p113
      %p116 = scmp.ne.s32.totalorder %s99, %s115
      %p117 = scmp.eq.s32.totalorder %s23, 0
      %p118 = por %p116, %p117
      %p119 = scmp.le.s32.totalorder 1, %s17
      %p120 = scmp.lt.s32.totalorder %s17, 3
      %p121 = pnand %p119, %p120
      %p122 = pneg %p121
      // Predicated region
      $region9: #{tpu_custom_call.1} parent=5 // pred_check
        _
      $region10: #{tpu_custom_call.1} parent=5 // pred_check_branch
        %124 = sbr.rel (%p121) target = $region12
      $region11: #{tpu_custom_call.1} parent=5 // pred_region
        %s125 = ssub.s32 %s17, 1
        // Predicated region
        $region13: #{tpu_custom_call.1} parent=11 // pred_check
          %p126 = pneg %p64
        $region14: #{tpu_custom_call.1} parent=11 // pred_check_branch
          %128 = sbr.rel (%p126) target = $region16
        $region15: #{tpu_custom_call.1} parent=11 // pred_region
          %s130 = ssub.s32 128, 128
          %131 = vsyncadd [#allocation7], %s130
          %s133 = sshll.u32 [#allocation6], 4
          %s134 = int_to_ptr.vmem [resolvable:$true] %s133
          %136 = dma.hbm_to_vmem [thread:$0]  %s1, 128, %s134, [#allocation7]
        $region16: #{tpu_custom_call.1} parent=11 // pred_fallthru
          _
        // Predicated region
        $region17: #{tpu_custom_call.1} parent=11 // pred_check
          %p137 = pneg %p85
        $region18: #{tpu_custom_call.1} parent=11 // pred_check_branch
          %139 = sbr.rel (%p137) target = $region20
        $region19: #{tpu_custom_call.1} parent=11 // pred_region
          %s141 = ssub.s32 16, 16
          %142 = vsyncadd [#allocation5], %s141
          %s144 = sshll.u32 %s2, 4
          %s145 = int_to_ptr.vmem [resolvable:$true] %s144
          %147 = dma.vmem_to_smem %s145, 16, [#allocation8], [#allocation5]
        $region20: #{tpu_custom_call.1} parent=11 // pred_fallthru
          _
      $region12: #{tpu_custom_call.1} parent=5 // pred_fallthru
        _
      %p148 = scmp.lt.s32.totalorder %s17, 2
      // Predicated region
      $region21: #{tpu_custom_call.1} parent=5 // pred_check
        %p149 = pneg %p148
      $region22: #{tpu_custom_call.1} parent=5 // pred_check_branch
        %151 = sbr.rel (%p149) target = $region24
      $region23: #{tpu_custom_call.1} parent=5 // pred_region
        // Predicated region
        $region25: #{tpu_custom_call.1} parent=23 // pred_check
          %p152 = pneg %p37
        $region26: #{tpu_custom_call.1} parent=23 // pred_check_branch
          %154 = sbr.rel (%p152) target = $region28
        $region27: #{tpu_custom_call.1} parent=23 // pred_region
          %s155 = sand.u32 %s27, 1
          %s156 = scalar_lea.sflag [#allocation3], %s155
          %s157 = sand.u32 %s27, 1
          %s158 = smul.addr %s157, 224
          %s159 = scalar_lea.vmem [#allocation2], %s158
          %s161 = ssub.s32 3584, 3584
          %162 = vsyncadd %s156, %s161
          %s163 = smul.addr %s17, 28
          %s164 = smul.addr %s163, 128
          %s165 = scalar_lea.hbm %s0, %s164
          %s166 = sshll.u32 %s159, 4
          %s167 = int_to_ptr.vmem [resolvable:$true] %s166
          %172 = dma.hbm_to_vmem [thread:$0]  %s165, 3584, %s167, %s156, 256, 256, 16
        $region28: #{tpu_custom_call.1} parent=23 // pred_fallthru
          _
      $region24: #{tpu_custom_call.1} parent=5 // pred_fallthru
        _
      %p173 = scmp.le.s32.totalorder 1, %s17
      %p174 = scmp.lt.s32.totalorder %s17, 3
      %p175 = pnand %p173, %p174
      %p176 = pneg %p175
      // Predicated region
      $region29: #{tpu_custom_call.1} parent=5 // pred_check
        _
      $region30: #{tpu_custom_call.1} parent=5 // pred_check_branch
        %178 = sbr.rel (%p175) target = $region32
      $region31: #{tpu_custom_call.1} parent=5 // pred_region
        %s179 = ssub.s32 %s17, 1
        %s180 = sand.u32 %s30, 1
        %s181 = scalar_lea.sflag [#allocation3], %s180
        %s182 = sand.u32 %s30, 1
        %s183 = smul.addr %s182, 224
        %s184 = scalar_lea.vmem [#allocation2], %s183
        // Predicated region
        $region33: #{tpu_custom_call.1} parent=31 // pred_check
          %p185 = pneg %p43
        $region34: #{tpu_custom_call.1} parent=31 // pred_check_branch
          %187 = sbr.rel (%p185) target = $region36
        $region35: #{tpu_custom_call.1} parent=31 // pred_region
          %188 = dma.done %s181, 3584
        $region36: #{tpu_custom_call.1} parent=31 // pred_fallthru
          _
        // Predicated region
        $region37: #{tpu_custom_call.1} parent=31 // pred_check
          %p189 = pneg %p64
        $region38: #{tpu_custom_call.1} parent=31 // pred_check_branch
          %191 = sbr.rel (%p189) target = $region40
        $region39: #{tpu_custom_call.1} parent=31 // pred_region
          %192 = dma.done [#allocation7], 128
        $region40: #{tpu_custom_call.1} parent=31 // pred_fallthru
          _
        // Predicated region
        $region41: #{tpu_custom_call.1} parent=31 // pred_check
          %p193 = pneg %p85
        $region42: #{tpu_custom_call.1} parent=31 // pred_check_branch
          %195 = sbr.rel (%p193) target = $region44
        $region43: #{tpu_custom_call.1} parent=31 // pred_region
          %196 = dma.done [#allocation5], 16
        $region44: #{tpu_custom_call.1} parent=31 // pred_fallthru
          _
        %197 = sfence
        %s198 = sand.u32 %s30, 1
        %s199 = scalar_lea.sflag [#allocation3], %s198
        %s200 = sand.u32 %s30, 1
        %s201 = smul.addr %s200, 224
        %s202 = scalar_lea.vmem [#allocation2], %s201
        %p203 = pneg %p43
        %p204 = pneg %p40
        %p205 = pneg %p64
        %p206 = pneg %p61
        %p207 = pneg %p85
        %p208 = pneg %p82
        %p209 = pneg %p111
        %p210 = pneg %p108
        %s211 = sand.u32 %s98, 1
        %s212 = scalar_lea.sflag [#allocation4], %s211
        %s213 = sand.u32 %s98, 1
        %s214 = smul.addr %s213, 8
        %s215 = scalar_lea.vmem [#allocation9], %s214
        %v216 = vld [vmem:[#allocation6] sm:$0xff]
        %s217 = sld [smem:[#allocation8]]
        %s218 = sld [smem:[#allocation8 + $0x1]]
        %s219 = sld [smem:[#allocation8 + $0x2]]
        %s220 = sld [smem:[#allocation8 + $0x3]]
        %v221 = vld [vmem:[%s184] sm:$0xff]
        %v222 = vld [vmem:[%s184 + $0x8] sm:$0xff]
        %v223 = vld [vmem:[%s184 + $0x10] sm:$0xff]
        %v224 = vld [vmem:[%s184 + $0x18] sm:$0xff]
        %v225 = vld [vmem:[%s184 + $0x20] sm:$0xff]
        %v226 = vld [vmem:[%s184 + $0x28] sm:$0xff]
        %v227 = vld [vmem:[%s184 + $0x30] sm:$0xff]
        %v228 = vld [vmem:[%s184 + $0x38] sm:$0xff]
        %v229 = vld [vmem:[%s184 + $0x40] sm:$0xff]
        %v230 = vld [vmem:[%s184 + $0x48] sm:$0xff]
        %v231 = vld [vmem:[%s184 + $0x50] sm:$0xff]
        %v232 = vld [vmem:[%s184 + $0x58] sm:$0xff]
        %v233 = vld [vmem:[%s184 + $0x60] sm:$0xff]
        %v234 = vld [vmem:[%s184 + $0x68] sm:$0xff]
        %v235 = vld [vmem:[%s184 + $0x70] sm:$0xff]
        %v236 = vld [vmem:[%s184 + $0x78] sm:$0xff]
        %v237 = vld [vmem:[%s184 + $0x80] sm:$0xff]
        %v238 = vld [vmem:[%s184 + $0x88] sm:$0xff]
        %v239 = vld [vmem:[%s184 + $0x90] sm:$0xff]
        %v240 = vld [vmem:[%s184 + $0x98] sm:$0xff]
        %v241 = vld [vmem:[%s184 + $0xa0] sm:$0xff]
        %v242 = vld [vmem:[%s184 + $0xa8] sm:$0xff]
        %v243 = vld [vmem:[%s184 + $0xb0] sm:$0xff]
        %v244 = vld [vmem:[%s184 + $0xb8] sm:$0xff]
        %v245 = vld [vmem:[%s184 + $0xc0] sm:$0xff]
        %v246 = vld [vmem:[%s184 + $0xc8] sm:$0xff]
        %v247 = vld [vmem:[%s184 + $0xd0] sm:$0xff]
        %v248 = vld [vmem:[%s184 + $0xd8] sm:$0xff]
        %vm249 = vcmask 916480
        %v251 = vsel %vm249, %v216, 0
        %253 = vmatprep.subr.mxu0 %v222
        %254 = vmatpush1.msra.mxu0 %v221
        %255 = vmatprep.subr.mxu0 %v224
        %256 = vmatpush1.msra.mxu0 %v223
        %257 = vmatprep.subr.mxu0 %v226
        %258 = vmatpush1.msra.mxu0 %v225
        %259 = vmatprep.subr.mxu0 %v228
        %260 = vmatpush1.msra.mxu0 %v227
        %261 = vmatprep.subr.mxu0 %v230
        %262 = vmatpush1.msra.mxu0 %v229
        %263 = vmatprep.subr.mxu0 %v232
        %264 = vmatpush1.msra.mxu0 %v231
        %265 = vmatprep.subr.mxu0 %v234
        %266 = vmatpush1.msra.mxu0 %v233
        %267 = vmatprep.subr.mxu0 %v236
        %268 = vmatpush1.msra.mxu0 %v235
        %269 = vmatprep.subr.mxu0 %v238
        %270 = vmatpush1.msra.mxu0 %v237
        %271 = vmatprep.subr.mxu0 %v240
        %272 = vmatpush1.msra.mxu0 %v239
        %273 = vmatprep.subr.mxu0 %v242
        %274 = vmatpush1.msra.mxu0 %v241
        %275 = vmatprep.subr.mxu0 %v244
        %276 = vmatpush1.msra.mxu0 %v243
        %277 = vmatprep.subr.mxu0 %v246
        %278 = vmatpush1.msra.mxu0 %v245
        %279 = vmatprep.subr.mxu0 %v248
        %280 = vmatpush1.msra.mxu0 %v247
        %281 = vmatprep.subr.mxu0 0.0
        %282 = vmatpush1.msra.mxu0 0.0
        %283 = vmatprep.subr.mxu0 0.0
        %284 = vmatpush1.msra.mxu0 0.0
        %285 = vmatprep.subr.mxu0 0.0
        %286 = vmatpush1.msra.mxu0 0.0
        %287 = vmatprep.subr.mxu0 0.0
        %288 = vmatpush1.msra.mxu0 0.0
        %289 = vmatprep.subr.mxu0 0.0
        %290 = vmatpush1.msra.mxu0 0.0
        %291 = vmatprep.subr.mxu0 0.0
        %292 = vmatpush1.msra.mxu0 0.0
        %293 = vmatprep.subr.mxu0 0.0
        %294 = vmatpush1.msra.mxu0 0.0
        %295 = vmatprep.subr.mxu0 0.0
        %296 = vmatpush1.msra.mxu0 0.0
        %297 = vmatprep.subr.mxu0 0.0
        %298 = vmatpush1.msra.mxu0 0.0
        %299 = vmatprep.subr.mxu0 0.0
        %300 = vmatpush1.msra.mxu0 0.0
        %301 = vmatprep.subr.mxu0 0.0
        %302 = vmatpush1.msra.mxu0 0.0
        %303 = vmatprep.subr.mxu0 0.0
        %304 = vmatpush1.msra.mxu0 0.0
        %305 = vmatprep.subr.mxu0 0.0
        %306 = vmatpush1.msra.mxu0 0.0
        %307 = vmatprep.subr.mxu0 0.0
        %308 = vmatpush1.msra.mxu0 0.0
        %309 = vmatprep.subr.mxu0 0.0
        %310 = vmatpush1.msra.mxu0 0.0
        %311 = vmatprep.subr.mxu0 0.0
        %312 = vmatpush1.msra.mxu0 0.0
        %313 = vmatprep.subr.mxu0 0.0
        %314 = vmatpush1.msra.mxu0 0.0
        %315 = vmatprep.subr.mxu0 0.0
        %316 = vmatpush1.msra.mxu0 0.0
        %317 = vmatprep.mubr.f32.mxu0 0.0
        %318 = vmatmul.mubr.f32.gmra.mrb[0].mxu0 %v251
        %v319 = vpop.f32.mrb[0].mxu0
        %v320 = vadd.f32 0.0, %v319
        %v321 = vpop.f32.mrb[0].mxu0
        %v322 = vadd.f32 0.0, %v321
        %323 = vdwg.mxu0
        %324 = vrot.lane.b32.xlu0 %v320, 112
        %v325 = vpop.permute.xlu0 %324
        %326 = vrot.lane.b32.xlu0 %v322, 112
        %v327 = vpop.permute.xlu0 %326
        %v328 = vlaneseq
        %v329 = vand.u32 %v328, 127
        %vm330 = vcmp.lt.s32.totalorder %v329, 112
        %v331 = vsel %vm330, %v325, %v327
        %v332 = vsel %vm330, %v327, %v325
        %333 = vrot.lane.b32.xlu0 %v320, 127
        %v334 = vpop.permute.xlu0 %333
        %335 = vrot.lane.b32.xlu0 %v322, 127
        %v336 = vpop.permute.xlu0 %335
        %vm337 = vcmp.lt.s32.totalorder %v329, 127
        %v338 = vsel %vm337, %v334, %v336
        %v339 = vsel %vm337, %v336, %v334
        %v342 = vrot.slane %v331, 1
        %v343 = vrot.slane %v332, 1
        %v346 = vadd.f32 %v320, %v342
        %v347 = vadd.f32 %v322, %v343
        %v348 = vstv %s217
        %v349 = vadd.f32 %v346, %v348
        %v350 = vadd.f32 %v347, %v348
        %v351 = vstv %s218
        %v352 = vadd.f32 %v346, %v351
        %v353 = vadd.f32 %v347, %v351
        %v356 = vrot.slane %v338, 1
        %v357 = vrot.slane %v339, 1
        %v360 = vadd.f32 %v320, %v356
        %v361 = vadd.f32 %v322, %v357
        %v362 = vstv %s219
        %v363 = vadd.f32 %v360, %v362
        %v364 = vadd.f32 %v361, %v362
        %v365 = vstv %s220
        %v366 = vadd.f32 %v360, %v365
        %v367 = vadd.f32 %v361, %v365
        %v370 = vrot.slane %v352, 1
        %v371 = vrot.slane %v353, 1
        %v376 = vrot.slane %v363, 2
        %v377 = vrot.slane %v364, 2
        %v382 = vrot.slane %v366, 3
        %v383 = vrot.slane %v367, 3
        %vm386 = vcmask 1040384
        %v387 = vsel %vm386, %v349, %v370
        %v388 = vsel %vm386, %v350, %v371
        %vm389 = vcmask 1041408
        %v390 = vsel %vm389, %v387, %v376
        %v391 = vsel %vm389, %v388, %v377
        %vm392 = vcmask 1042432
        %v393 = vsel %vm392, %v390, %v382
        %v394 = vsel %vm392, %v391, %v383
        %v397 = vcombine.low %v393, %v394
        %399 = vst [vmem:[%s215] sm:$0xff] %v397
        %s400 = sand.u32 %s98, 1
        %s401 = scalar_lea.sflag [#allocation4], %s400
        %s402 = sand.u32 %s98, 1
        %s403 = smul.addr %s402, 8
        %s404 = scalar_lea.vmem [#allocation9], %s403
        // Predicated region
        $region45: #{tpu_custom_call.1} parent=31 // pred_check
          %p405 = pneg %p108
        $region46: #{tpu_custom_call.1} parent=31 // pred_check_branch
          %407 = sbr.rel (%p405) target = $region48
        $region47: #{tpu_custom_call.1} parent=31 // pred_region
          %s409 = ssub.s32 128, 128
          %410 = vsyncadd %s401, %s409
          %s411 = smul.addr %s22, 2
          %s412 = smul.addr %s411, 64
          %s413 = scalar_lea.hbm %s3, %s412
          %s415 = sshll.u32 %s404, 4
          %s416 = int_to_ptr.vmem [resolvable:$true] %s415
          %418 = dma.vmem_to_hbm [thread:$0]  %s416, 128, %s413, %s401
        $region48: #{tpu_custom_call.1} parent=31 // pred_fallthru
          _
      $region32: #{tpu_custom_call.1} parent=5 // pred_fallthru
        _
      %p419 = scmp.le.s32.totalorder 2, %s17
      // Predicated region
      $region49: #{tpu_custom_call.1} parent=5 // pred_check
        %p420 = pneg %p419
      $region50: #{tpu_custom_call.1} parent=5 // pred_check_branch
        %422 = sbr.rel (%p420) target = $region52
      $region51: #{tpu_custom_call.1} parent=5 // pred_region
        %s423 = ssub.s32 %s17, 2
        // Predicated region
        $region53: #{tpu_custom_call.1} parent=51 // pred_check
          %p424 = pneg %p114
        $region54: #{tpu_custom_call.1} parent=51 // pred_check_branch
          %426 = sbr.rel (%p424) target = $region56
        $region55: #{tpu_custom_call.1} parent=51 // pred_region
          %s427 = sand.u32 %s99, 1
          %s428 = scalar_lea.sflag [#allocation4], %s427
          %s429 = sand.u32 %s99, 1
          %s430 = smul.addr %s429, 8
          %s431 = scalar_lea.vmem [#allocation9], %s430
          %432 = dma.done %s428, 128
        $region56: #{tpu_custom_call.1} parent=51 // pred_fallthru
          _
      $region52: #{tpu_custom_call.1} parent=5 // pred_fallthru
        _
    $region6: #{tpu_custom_call.1} parent=1 // loop_footer
      %s21 = sadd.s32 1, %s17
    $region7: #{tpu_custom_call.1} parent=1 // loop_footer_branch
      %16 = sbr.rel target = $region3
    $region8: #{tpu_custom_call.1} parent=1 // loop_exit
      _
    %433 = vsyncpa [#allocation3], 1
    %s434 = scalar_lea.sflag [#allocation3], 1
    %435 = vsyncpa %s434, 1
    %436 = vsyncpa [#allocation7], 1
    %437 = vsyncpa [#allocation4], 1
    %s438 = scalar_lea.sflag [#allocation4], 1
    %439 = vsyncpa %s438, 1
    %440 = vsyncpa [#allocation5], 1
    %s441 = scalar_lea.sflag [#allocation5], 1
    %442 = vsyncpa %s441, 1

</llo_original>
